<compile_context>
chip_gen: v5e
topology: v5e:2x2
jax: 0.10.0
libtpu: 0.0.40
codegen_flags: <defaults>
</compile_context>

<pallas_src>
import math

import jax
import jax.numpy as jnp
from jax.experimental import pallas as pl
from jax.experimental.pallas import tpu as pltpu


def _round_up(a: int, b: int) -> int:
    return ((a + b - 1) // b) * b


def _cdiv(a: int, b: int) -> int:
    return -(-a // b)


def _head_kernel(x_ref, w_ref, b_ref, o_ref):
    """One (tm, N) output tile, accumulated in place (f32) over the K grid axis.

    x_ref: (tm, tk)  bf16/f32  activations (K on lanes)
    w_ref: (N,  tk)  bf16/f32  weight in PyTorch [out, in] layout (K on lanes)
    b_ref: (1,  N)   f32       bias
    o_ref: (tm, N)   f32       resident output tile (index_map ignores k)
    """
    s = pl.program_id(0)   # split-K partial index ("parallel")
    k = pl.program_id(2)   # reduction step within this split (MUST be last grid axis)

    @pl.when(k == 0)
    def _init():
        # Partial 0 starts from the bias, all other partials start from zero, so the
        # wrapper-side sum over splits adds the bias exactly once.
        bias = jnp.where(s == 0, b_ref[...], jnp.zeros_like(b_ref))
        o_ref[...] = jnp.broadcast_to(bias, o_ref.shape).astype(o_ref.dtype)

    # X @ W^T: contract the lane (K) axis of both operands on the MXU, accumulate in f32
    # directly into the resident output block.
    o_ref[...] += jax.lax.dot_general(
        x_ref[...], w_ref[...],
        dimension_numbers=(((1,), (1,)), ((), ())),
        preferred_element_type=jnp.float32,
    )


def prepare_classification_head(weight, bias, *, tile_m=256, tile_k=2048,
                                n_split=2, param_dtype=jnp.bfloat16):
    """One-time (model-init) preparation of the Linear parameters.

    weight: [target_window, K]  (PyTorch nn.Linear layout, K = n_vars * d_ff * patch_num)
    bias:   [target_window]
    param_dtype: bf16 halves weight DMA bytes (f32 accumulation); pass jnp.float32 if
      bit-fidelity to the PyTorch f32 Linear matters at very large K.

    Returns (w_prep, b_prep, meta) — pass these to classification_head_forward so the
    per-call path never re-reads / re-writes the full weight outside the kernel.
    """
    N, K = weight.shape

    # Pad K to a lane multiple, and (cheaply, <= (n_split-1)*128 extra columns of zeros)
    # so the 128-column count splits evenly across the split-K partials.
    cols = _cdiv(K, 128)
    n_split = max(1, min(int(n_split), cols))
    cols_pad = _round_up(cols, n_split)
    K_pad = cols_pad * 128
    per_split_k = (cols_pad // n_split) * 128

    # Largest lane-multiple K tile that divides the per-split K range (<= tile_k):
    # long DMAs, no ragged tile, no further weight padding.
    tk = 128
    t = 128
    limit = min(int(tile_k), per_split_k)
    while t <= limit:
        if per_split_k % t == 0:
            tk = t
        t += 128
    ksteps = per_split_k // tk

    w_prep = jnp.pad(weight, ((0, 0), (0, K_pad - K))).astype(param_dtype)
    b_prep = bias.astype(jnp.float32).reshape(1, N)

    meta = dict(N=int(N), K=int(K), K_pad=int(K_pad), tk=int(tk),
                ksteps=int(ksteps), n_split=int(n_split),
                tile_m=int(tile_m), param_dtype=param_dtype)
    return w_prep, b_prep, meta


def classification_head_forward(x, w_prep, b_prep, meta, out_dtype=jnp.float32):
    """ClassificationHead forward: x [B, n_vars, d_ff, patch_num] -> [B, target_window]."""
    N = meta["N"]
    K = meta["K"]
    K_pad = meta["K_pad"]
    tk = meta["tk"]
    ksteps = meta["ksteps"]
    n_split = meta["n_split"]
    tile_m = meta["tile_m"]
    pdt = meta["param_dtype"]

    B = x.shape[0]
    assert math.prod(x.shape[1:]) == K, (x.shape, K)

    # Per-call activation glue only (Flatten + pad/cast of the tiny [B, K] activation);
    # the weight was prepared once at init.
    x2 = x.reshape(B, K)
    M = B
    m_gran = 16 if pdt == jnp.bfloat16 else 8     # match bf16 (16,128) sublane packing
    m_tiles = _cdiv(_round_up(M, m_gran), tile_m)
    tm = _round_up(_cdiv(_round_up(M, m_gran), m_tiles), m_gran)   # even M split, no big pad
    M_pad = tm * m_tiles
    x2p = jnp.pad(x2, ((0, M_pad - M), (0, K_pad - K))).astype(pdt)

    grid = (n_split, m_tiles, ksteps)

    y_parts = pl.pallas_call(
        _head_kernel,
        out_shape=jax.ShapeDtypeStruct((n_split, M_pad, N), jnp.float32),
        grid_spec=pltpu.PrefetchScalarGridSpec(
            num_scalar_prefetch=0,
            grid=grid,
            in_specs=[
                # X: [M_pad, K_pad], block (tm, tk); split s owns K tiles
                # [s*ksteps, (s+1)*ksteps).
                pl.BlockSpec((tm, tk), lambda s, i, k: (i, s * ksteps + k)),
                # W: [N, K_pad] (PyTorch layout, K on lanes), block (N, tk).
                pl.BlockSpec((N, tk), lambda s, i, k: (0, s * ksteps + k)),
                # bias: [1, N], same tiny block every step.
                pl.BlockSpec((1, N), lambda s, i, k: (0, 0)),
            ],
            # Output partials: block index ignores k -> resident f32 accumulator.
            out_specs=pl.BlockSpec((None, tm, N), lambda s, i, k: (s, i, 0)),
        ),
        compiler_params=pltpu.CompilerParams(
            # split-K and M tiles are independent (v7x megacore sharding); the K step is
            # the reduction and must stay the innermost, sequential axis.
            dimension_semantics=("parallel", "parallel", "arbitrary"),
        ),
    )(x2p, w_prep, b_prep)

    y = y_parts[0] if n_split == 1 else jnp.sum(y_parts, axis=0)
    return y[:M, :N].astype(out_dtype)


def reference_forward(x, weight, bias):
    B = x.shape[0]
    x2 = x.reshape(B, -1)
    return x2 @ weight.T + bias


if __name__ == "__main__":
    # Small shapes consistent with Model.forecast -> output_projection input
    # out[:, :, :, -patch_num:] of shape [B, enc_in, d_ff, patch_num]:
    B, n_vars, d_ff, patch_num = 2, 4, 32, 8
    nf = d_ff * patch_num                  # head_nf
    K = n_vars * nf                        # Linear fan-in after Flatten(start_dim=1)
    target_window = 32                     # pred_len

    key = jax.random.PRNGKey(0)
    kx, kw, kb = jax.random.split(key, 3)

    x = jax.random.normal(kx, (B, n_vars, d_ff, patch_num), dtype=jnp.float32)

    # xavier_uniform_ weight init (as in ClassificationHead); default Linear bias init.
    w_bound = math.sqrt(6.0 / (K + target_window))
    weight = jax.random.uniform(kw, (target_window, K), jnp.float32, -w_bound, w_bound)
    b_bound = 1.0 / math.sqrt(K)
    bias = jax.random.uniform(kb, (target_window,), jnp.float32, -b_bound, b_bound)

    # One-time weight preparation (hoisted out of the per-call path).
    w_prep, b_prep, meta = prepare_classification_head(weight, bias,
                                                       tile_k=2048, n_split=2)

    # TODO(synk): Dropout(head_dropout=0.1) omitted — identity in eval mode.
    fwd = jax.jit(lambda xx: classification_head_forward(xx, w_prep, b_prep, meta))
    y = jax.block_until_ready(fwd(x))
    y_ref = reference_forward(x, weight, bias)

    assert y.shape == (B, target_window), y.shape
    # bf16 MXU inputs with f32 accumulation: ~few e-3 abs error at K=1024.
    max_err = float(jnp.max(jnp.abs(y - y_ref)))
    assert jnp.allclose(y, y_ref, atol=2e-2, rtol=2e-2), (
        "mismatch vs reference, max abs err = %f" % max_err)

    print("KERNEL_OK")
</pallas_src>

<mosaic_0001>
module attributes {stable_mosaic.version = 11 : i64} {
  func.func @_head_kernel(%arg0: i32, %arg1: i32, %arg2: i32, %arg3: memref<16x512xbf16, #tpu.memory_space<vmem>>, %arg4: memref<32x512xbf16, #tpu.memory_space<vmem>>, %arg5: memref<1x32xf32, #tpu.memory_space<vmem>>, %arg6: memref<1x16x32xf32, #tpu.memory_space<vmem>>) attributes {dimension_semantics = [#tpu.dimension_semantics<parallel>, #tpu.dimension_semantics<parallel>, #tpu.dimension_semantics<arbitrary>], iteration_bounds = array<i64: 2, 1, 1>, scalar_prefetch = 0 : i64, scratch_operands = 0 : i64, tpu.core_type = #tpu.core_type<tc>, window_params = [{transform_indices = @transform_0, window_bounds = array<i64: 16, 512>}, {transform_indices = @transform_1, window_bounds = array<i64: 32, 512>}, {pipeline_mode = #tpu.pipeline_mode<synchronous>, transform_indices = @transform_2, window_bounds = array<i64: 1, 32>}, {transform_indices = @transform_3, window_bounds = array<i64: 1, 16, 32>}]} {
    %c0_i32 = arith.constant 0 : i32
    %0 = arith.cmpi eq, %arg2, %c0_i32 : i32
    %1 = arith.extui %0 : i1 to i32
    %c0_i32_0 = arith.constant 0 : i32
    %2 = arith.cmpi ne, %1, %c0_i32_0 : i32
    scf.if %2 {
      %c0_i32_10 = arith.constant 0 : i32
      %12 = arith.cmpi eq, %arg0, %c0_i32_10 : i32
      %c0_11 = arith.constant 0 : index
      %c0_12 = arith.constant 0 : index
      %13 = vector.load %arg5[%c0_11, %c0_12] : memref<1x32xf32, #tpu.memory_space<vmem>>, vector<1x32xf32>
      %cst_13 = arith.constant 0.000000e+00 : f32
      %14 = vector.broadcast %cst_13 : f32 to vector<1x32xf32>
      %15 = arith.select %12, %13, %14 : vector<1x32xf32>
      %16 = vector.shape_cast %15 : vector<1x32xf32> to vector<1x32xf32>
      %17 = vector.broadcast %16 : vector<1x32xf32> to vector<16x32xf32>
      %c0_14 = arith.constant 0 : index
      %c0_15 = arith.constant 0 : index
      %c0_16 = arith.constant 0 : index
      %18 = vector.load %arg6[%c0_14, %c0_15, %c0_16] : memref<1x16x32xf32, #tpu.memory_space<vmem>>, vector<1x16x32xf32>
      %19 = vector.shape_cast %18 : vector<1x16x32xf32> to vector<16x32xf32>
      %20 = vector.shape_cast %17 : vector<16x32xf32> to vector<1x16x32xf32>
      tpu.vector_store %arg6[%c0_14, %c0_15, %c0_16], %20 {strides = array<i32>} : memref<1x16x32xf32, #tpu.memory_space<vmem>>, vector<1x16x32xf32>,
    } else {
    }
    %c0 = arith.constant 0 : index
    %c0_1 = arith.constant 0 : index
    %c0_2 = arith.constant 0 : index
    %3 = vector.load %arg6[%c0, %c0_1, %c0_2] : memref<1x16x32xf32, #tpu.memory_space<vmem>>, vector<1x16x32xf32>
    %4 = vector.shape_cast %3 : vector<1x16x32xf32> to vector<16x32xf32>
    %c0_3 = arith.constant 0 : index
    %c0_4 = arith.constant 0 : index
    %5 = vector.load %arg3[%c0_3, %c0_4] : memref<16x512xbf16, #tpu.memory_space<vmem>>, vector<16x512xbf16>
    %c0_5 = arith.constant 0 : index
    %c0_6 = arith.constant 0 : index
    %6 = vector.load %arg4[%c0_5, %c0_6] : memref<32x512xbf16, #tpu.memory_space<vmem>>, vector<32x512xbf16>
    %cst = arith.constant dense<0.000000e+00> : vector<16x32xf32>
    %7 = tpu.matmul %5, %6, %cst {dimension_numbers = #tpu.dot_dimension_numbers<[1], [1], [0], [0], [0, 0, 1, 0], [], []>} : vector<16x512xbf16>, vector<32x512xbf16>, vector<16x32xf32> -> vector<16x32xf32>
    %8 = arith.addf %4, %7 : vector<16x32xf32>
    %c0_7 = arith.constant 0 : index
    %c0_8 = arith.constant 0 : index
    %c0_9 = arith.constant 0 : index
    %9 = vector.load %arg6[%c0_7, %c0_8, %c0_9] : memref<1x16x32xf32, #tpu.memory_space<vmem>>, vector<1x16x32xf32>
    %10 = vector.shape_cast %9 : vector<1x16x32xf32> to vector<16x32xf32>
    %11 = vector.shape_cast %8 : vector<16x32xf32> to vector<1x16x32xf32>
    tpu.vector_store %arg6[%c0_7, %c0_8, %c0_9], %11 {strides = array<i32>} : memref<1x16x32xf32, #tpu.memory_space<vmem>>, vector<1x16x32xf32>,
    return
  }
  func.func @transform_0(%arg0: i32, %arg1: i32, %arg2: i32) -> (i32, i32) {
    %c1_i32 = arith.constant 1 : i32
    %0 = arith.muli %arg0, %c1_i32 : i32
    %1 = arith.addi %0, %arg2 : i32
    %c0_i32 = arith.constant 0 : i32
    return %arg1, %1 : i32, i32
  }
  func.func @transform_1(%arg0: i32, %arg1: i32, %arg2: i32) -> (i32, i32) {
    %c1_i32 = arith.constant 1 : i32
    %0 = arith.muli %arg0, %c1_i32 : i32
    %1 = arith.addi %0, %arg2 : i32
    %c0_i32 = arith.constant 0 : i32
    %c0_i32_0 = arith.constant 0 : i32
    return %c0_i32, %1 : i32, i32
  }
  func.func @transform_2(%arg0: i32, %arg1: i32, %arg2: i32) -> (i32, i32) {
    %c0_i32 = arith.constant 0 : i32
    %c0_i32_0 = arith.constant 0 : i32
    %c0_i32_1 = arith.constant 0 : i32
    return %c0_i32, %c0_i32_0 : i32, i32
  }
  func.func @transform_3(%arg0: i32, %arg1: i32, %arg2: i32) -> (i32, i32, i32) {
    %c0_i32 = arith.constant 0 : i32
    %c0_i32_0 = arith.constant 0 : i32
    return %arg0, %arg1, %c0_i32 : i32, i32, i32
  }
}

</mosaic_0001>

<llo_original>
// kernel: _lambda_.1
$region0: #{_lambda_.1}
  #allocation0 [shape = 'u32[]', space=smem, size = 0x4, offset = 0x4, fixed_abs, tag = 'smem constant byte address 0x4 - core index']
  #allocation1 [shape = 'u32[72,128]{1,0:T(1,128)}', space=vmem, size = 0x9000, scoped, tag = 'internal scratch']
  %s0 = inlined_call_operand.vmem [shape: bf16[16,1024], index: 0, kind: input, shape index: {}]
  %s1 = inlined_call_operand.vmem [shape: bf16[32,1024], index: 1, kind: input, shape index: {}]
  %s2 = inlined_call_operand.vmem [shape: f32[1,32], index: 2, kind: input, shape index: {}]
  %s3 = inlined_call_operand.vmem [shape: f32[2,16,32], index: 3, kind: output, shape index: {}]
  %s4 = sld [smem:[#allocation0]]
  $region95: #{_lambda_.1} parent=0
    _
  %s6 = ssub.s32 1, %s4
  %s7 = scalar_select 0, %s6, %s4
  $region1: #{_lambda_.1} parent=0
    #allocation2 [shape = 'u8[32768]{0}', space=vmem, size = 0x8000, scoped, tag = 'input window, operand 0']
    #allocation3 [shape = 'u8[65536]{0}', space=vmem, size = 0x10000, scoped, tag = 'input window, operand 1']
    loop: start=0, step=1, limit=4
    $region2: #{_lambda_.1} parent=1 // loop_pre_header
      _
    $region3: #{_lambda_.1} parent=1 // loop_header
      %s9 = sphi 0, %s13
      %p10 = scmp.ge.s32.totalorder %s9, 4
      %s16 = sphi 0, %s35
      %s17 = sphi 0, %s31
      %s18 = sphi 0, %s27
      %s19 = sphi 0, %s16
      %s20 = sphi 0, %s17
      %s21 = sphi 0, %s18
      %s22 = sphi 0, %s19
      %s23 = sphi 0, %s20
      %s24 = sphi 0, %s21
      %s42 = sphi 0, %s44
      %s45 = sphi 0, %s42
      %s46 = sphi 0, %s45
      %s62 = sphi 0, %s46
      %s70 = sphi 0, %s72
      %s73 = sphi 0, %s70
      %s74 = sphi 0, %s73
      %s90 = sphi 0, %s74
      %s94 = sphi 0, %s94
      %s96 = sphi 0, %s94
      %s97 = sphi 0, %s96
      %s111 = sphi 0, %s97
      %s119 = sphi 0, %s121
      %s122 = sphi 0, %s119
      %s123 = sphi 0, %s122
      %s139 = sphi 0, %s123
    $region4: #{_lambda_.1} parent=1 // loop_header_branch
      %12 = sbr.rel (%p10) target = $region8
    $region5: #{_lambda_.1} parent=1 // loop_body
      %s14 = ssub.s32 %s9, 1
      %s15 = ssub.s32 %s9, 2
      %s25 = sadd.s32 1, %s18
      %p26 = scmp.ge.s32.totalorder %s25, 1
      %s27 = scalar_select %p26, 0, %s25
      %s28 = sadd.s32 1, %s17
      %s29 = scalar_select %p26, %s28, %s17
      %p30 = scmp.ge.s32.totalorder %s29, 1
      %s31 = scalar_select %p30, 0, %s29
      %s32 = sadd.s32 1, %s16
      %s33 = scalar_select %p30, %s32, %s16
      %p34 = scmp.ge.s32.totalorder %s33, 2
      %s35 = scalar_select %p34, 0, %s33
      %s36 = sadd.s32 %s16, %s18
      %s37 = sadd.s32 %s35, %s27
      %s38 = ssub.s32 %s17, %s31
      %s39 = ssub.s32 %s36, %s37
      %s40 = sor.u32 %s38, %s39
      %p41 = scmp.eq.s32.totalorder %s40, 0
      %s43 = sadd.s32 %s42, 1
      %s44 = scalar_select %p41, %s42, %s43
      %p47 = pneg %p41
      %p48 = scmp.eq.s32.totalorder %s9, 1
      %p49 = por %p47, %p48
      %p50 = scmp.ne.s32.totalorder %s42, %s45
      %p51 = scmp.eq.s32.totalorder %s9, 0
      %p52 = por %p50, %p51
      %p53 = scmp.ne.s32.totalorder %s42, %s45
      %p54 = scmp.eq.s32.totalorder %s14, 1
      %p55 = por %p53, %p54
      %p56 = scmp.ne.s32.totalorder %s45, %s46
      %p57 = scmp.eq.s32.totalorder %s14, 0
      %p58 = por %p56, %p57
      %p59 = scmp.ne.s32.totalorder %s45, %s46
      %p60 = scmp.eq.s32.totalorder %s15, 1
      %p61 = por %p59, %p60
      %p63 = scmp.ne.s32.totalorder %s46, %s62
      %p64 = scmp.eq.s32.totalorder %s15, 0
      %p65 = por %p63, %p64
      %s66 = sadd.s32 %s16, %s18
      %s67 = sadd.s32 %s35, %s27
      %s68 = ssub.s32 %s66, %s67
      %p69 = scmp.eq.s32.totalorder %s68, 0
      %s71 = sadd.s32 %s70, 1
      %s72 = scalar_select %p69, %s70, %s71
      %p75 = pneg %p69
      %p76 = scmp.eq.s32.totalorder %s9, 1
      %p77 = por %p75, %p76
      %p78 = scmp.ne.s32.totalorder %s70, %s73
      %p79 = scmp.eq.s32.totalorder %s9, 0
      %p80 = por %p78, %p79
      %p81 = scmp.ne.s32.totalorder %s70, %s73
      %p82 = scmp.eq.s32.totalorder %s14, 1
      %p83 = por %p81, %p82
      %p84 = scmp.ne.s32.totalorder %s73, %s74
      %p85 = scmp.eq.s32.totalorder %s14, 0
      %p86 = por %p84, %p85
      %p87 = scmp.ne.s32.totalorder %s73, %s74
      %p88 = scmp.eq.s32.totalorder %s15, 1
      %p89 = por %p87, %p88
      %p91 = scmp.ne.s32.totalorder %s74, %s90
      %p92 = scmp.eq.s32.totalorder %s15, 0
      %p93 = por %p91, %p92
      %s95 = sadd.s32 %s94, 1
      %p98 = scmp.eq.s32.totalorder %s9, 1
      %p99 = scmp.ne.s32.totalorder %s94, %s96
      %p100 = scmp.eq.s32.totalorder %s9, 0
      %p101 = por %p99, %p100
      %p102 = scmp.ne.s32.totalorder %s94, %s96
      %p103 = scmp.eq.s32.totalorder %s14, 1
      %p104 = por %p102, %p103
      %p105 = scmp.ne.s32.totalorder %s96, %s97
      %p106 = scmp.eq.s32.totalorder %s14, 0
      %p107 = por %p105, %p106
      %p108 = scmp.ne.s32.totalorder %s96, %s97
      %p109 = scmp.eq.s32.totalorder %s15, 1
      %p110 = por %p108, %p109
      %p112 = scmp.ne.s32.totalorder %s97, %s111
      %p113 = scmp.eq.s32.totalorder %s15, 0
      %p114 = por %p112, %p113
      %s115 = ssub.s32 %s16, %s35
      %s116 = ssub.s32 %s17, %s31
      %s117 = sor.u32 %s115, %s116
      %p118 = scmp.eq.s32.totalorder %s117, 0
      %s120 = sadd.s32 %s119, 1
      %s121 = scalar_select %p118, %s119, %s120
      %p124 = pneg %p118
      %p125 = scmp.eq.s32.totalorder %s9, 1
      %p126 = por %p124, %p125
      %p127 = scmp.ne.s32.totalorder %s119, %s122
      %p128 = scmp.eq.s32.totalorder %s9, 0
      %p129 = por %p127, %p128
      %p130 = scmp.ne.s32.totalorder %s119, %s122
      %p131 = scmp.eq.s32.totalorder %s14, 1
      %p132 = por %p130, %p131
      %p133 = scmp.ne.s32.totalorder %s122, %s123
      %p134 = scmp.eq.s32.totalorder %s14, 0
      %p135 = por %p133, %p134
      %p136 = scmp.ne.s32.totalorder %s122, %s123
      %p137 = scmp.eq.s32.totalorder %s15, 1
      %p138 = por %p136, %p137
      %p140 = scmp.ne.s32.totalorder %s123, %s139
      %p141 = scmp.eq.s32.totalorder %s15, 0
      %p142 = por %p140, %p141
      %p143 = scmp.le.s32.totalorder 1, %s9
      %p144 = scmp.lt.s32.totalorder %s9, 3
      %p145 = pnand %p143, %p144
      %p146 = pneg %p145
      // Predicated region
      $region9: #{_lambda_.1} parent=5 // pred_check
        _
      $region10: #{_lambda_.1} parent=5 // pred_check_branch
        %148 = sbr.rel (%p145) target = $region12
      $region11: #{_lambda_.1} parent=5 // pred_region
        %s149 = ssub.s32 %s9, 1
        // Predicated region
        $region13: #{_lambda_.1} parent=11 // pred_check
          %p150 = pneg %p107
        $region14: #{_lambda_.1} parent=11 // pred_check_branch
          %152 = sbr.rel (%p150) target = $region16
        $region15: #{_lambda_.1} parent=11 // pred_region
          _
        $region16: #{_lambda_.1} parent=11 // pred_fallthru
          _
      $region12: #{_lambda_.1} parent=5 // pred_fallthru
        _
      %p153 = scmp.lt.s32.totalorder %s9, 2
      // Predicated region
      $region17: #{_lambda_.1} parent=5 // pred_check
        %p154 = pneg %p153
      $region18: #{_lambda_.1} parent=5 // pred_check_branch
        %156 = sbr.rel (%p154) target = $region20
      $region19: #{_lambda_.1} parent=5 // pred_region
        // Predicated region
        $region21: #{_lambda_.1} parent=19 // pred_check
          %p157 = pneg %p52
        $region22: #{_lambda_.1} parent=19 // pred_check_branch
          %159 = sbr.rel (%p157) target = $region24
        $region23: #{_lambda_.1} parent=19 // pred_region
          %s160 = sand.u32 %s42, 1
          %s161 = sand.u32 %s42, 1
          %s162 = smul.addr %s161, 32
          %s163 = scalar_lea.vmem [#allocation2], %s162
          %s164 = sadd.s32 %s16, %s18
          %s165 = smul.u32 2, %s17
          %s166 = smul.u32 4, %s164
          %s167 = smul.addr %s165, 8
          %s168 = sadd.s32 %s166, %s167
          %s169 = smul.addr %s168, 4
          %s170 = scalar_lea.vmem %s0, %s169
          // Predicated region
          $region25: #{_lambda_.1} parent=23 // pred_check
            _
          $region26: #{_lambda_.1} parent=23 // pred_check_branch
            %172 = sbr.rel (0) target = $region28
          $region27: #{_lambda_.1} parent=23 // pred_region
            // Predicated region
            $region29: #{_lambda_.1} parent=27 // pred_check
              _
            $region30: #{_lambda_.1} parent=27 // pred_check_branch
              %174 = sbr.rel (0) target = $region32
            $region31: #{_lambda_.1} parent=27 // pred_region
              loop: start=0, step=1, limit=1
              $region33: #{_lambda_.1} parent=31 // loop_pre_header
                _
              $region34: #{_lambda_.1} parent=31 // loop_header
                %s176 = sphi 0, %s180
                %p177 = scmp.ge.s32.totalorder %s176, 1
                %s181 = sphi %s170, %s170
                %s182 = sphi %s163, %s163
              $region35: #{_lambda_.1} parent=31 // loop_header_branch
                %179 = sbr.rel (%p177) target = $region39
              $region36: #{_lambda_.1} parent=31 // loop_body
                %v183 = vld [vmem:[%s181] sm:$0xff]
                %184 = vst [vmem:[%s182] sm:$0xff] %v183
                %v185 = vld [vmem:[%s181 + $0x8] sm:$0xff]
                %186 = vst [vmem:[%s182 + $0x8] sm:$0xff] %v185
                %v187 = vld [vmem:[%s181 + $0x20] sm:$0xff]
                %188 = vst [vmem:[%s182 + $0x10] sm:$0xff] %v187
                %v189 = vld [vmem:[%s181 + $0x28] sm:$0xff]
                %190 = vst [vmem:[%s182 + $0x18] sm:$0xff] %v189
              $region37: #{_lambda_.1} parent=31 // loop_footer
                %s180 = sadd.s32 1, %s176
              $region38: #{_lambda_.1} parent=31 // loop_footer_branch
                %175 = sbr.rel target = $region34
              $region39: #{_lambda_.1} parent=31 // loop_exit
                _
            $region32: #{_lambda_.1} parent=27 // pred_fallthru
              _
            // Predicated region
            $region40: #{_lambda_.1} parent=27 // pred_check
              _
            $region41: #{_lambda_.1} parent=27 // pred_check_branch
              %192 = sbr.rel target = $region43
            $region42: #{_lambda_.1} parent=27 // pred_region
              _
            $region43: #{_lambda_.1} parent=27 // pred_fallthru
              _
          $region28: #{_lambda_.1} parent=23 // pred_fallthru
            _
          %193 = vnop
        $region24: #{_lambda_.1} parent=19 // pred_fallthru
          _
        // Predicated region
        $region44: #{_lambda_.1} parent=19 // pred_check
          %p194 = pneg %p80
        $region45: #{_lambda_.1} parent=19 // pred_check_branch
          %196 = sbr.rel (%p194) target = $region47
        $region46: #{_lambda_.1} parent=19 // pred_region
          %s197 = sand.u32 %s70, 1
          %s198 = sand.u32 %s70, 1
          %s199 = smul.addr %s198, 64
          %s200 = scalar_lea.vmem [#allocation3], %s199
          %s201 = sadd.s32 %s16, %s18
          %s202 = smul.u32 4, %s201
          %s203 = smul.addr %s202, 4
          %s204 = scalar_lea.vmem %s1, %s203
          // Predicated region
          $region48: #{_lambda_.1} parent=46 // pred_check
            _
          $region49: #{_lambda_.1} parent=46 // pred_check_branch
            %206 = sbr.rel (0) target = $region51
          $region50: #{_lambda_.1} parent=46 // pred_region
            // Predicated region
            $region52: #{_lambda_.1} parent=50 // pred_check
              _
            $region53: #{_lambda_.1} parent=50 // pred_check_branch
              %208 = sbr.rel (0) target = $region55
            $region54: #{_lambda_.1} parent=50 // pred_region
              loop: start=0, step=1, limit=1
              $region56: #{_lambda_.1} parent=54 // loop_pre_header
                _
              $region57: #{_lambda_.1} parent=54 // loop_header
                %s210 = sphi 0, %s214
                %p211 = scmp.ge.s32.totalorder %s210, 1
                %s215 = sphi %s204, %s204
                %s216 = sphi %s200, %s200
              $region58: #{_lambda_.1} parent=54 // loop_header_branch
                %213 = sbr.rel (%p211) target = $region62
              $region59: #{_lambda_.1} parent=54 // loop_body
                %v217 = vld [vmem:[%s215] sm:$0xff]
                %218 = vst [vmem:[%s216] sm:$0xff] %v217
                %v219 = vld [vmem:[%s215 + $0x8] sm:$0xff]
                %220 = vst [vmem:[%s216 + $0x8] sm:$0xff] %v219
                %v221 = vld [vmem:[%s215 + $0x20] sm:$0xff]
                %222 = vst [vmem:[%s216 + $0x10] sm:$0xff] %v221
                %v223 = vld [vmem:[%s215 + $0x28] sm:$0xff]
                %224 = vst [vmem:[%s216 + $0x18] sm:$0xff] %v223
                %v225 = vld [vmem:[%s215 + $0x40] sm:$0xff]
                %226 = vst [vmem:[%s216 + $0x20] sm:$0xff] %v225
                %v227 = vld [vmem:[%s215 + $0x48] sm:$0xff]
                %228 = vst [vmem:[%s216 + $0x28] sm:$0xff] %v227
                %v229 = vld [vmem:[%s215 + $0x60] sm:$0xff]
                %230 = vst [vmem:[%s216 + $0x30] sm:$0xff] %v229
                %v231 = vld [vmem:[%s215 + $0x68] sm:$0xff]
                %232 = vst [vmem:[%s216 + $0x38] sm:$0xff] %v231
              $region60: #{_lambda_.1} parent=54 // loop_footer
                %s214 = sadd.s32 1, %s210
              $region61: #{_lambda_.1} parent=54 // loop_footer_branch
                %209 = sbr.rel target = $region57
              $region62: #{_lambda_.1} parent=54 // loop_exit
                _
            $region55: #{_lambda_.1} parent=50 // pred_fallthru
              _
            // Predicated region
            $region63: #{_lambda_.1} parent=50 // pred_check
              _
            $region64: #{_lambda_.1} parent=50 // pred_check_branch
              %234 = sbr.rel target = $region66
            $region65: #{_lambda_.1} parent=50 // pred_region
              _
            $region66: #{_lambda_.1} parent=50 // pred_fallthru
              _
          $region51: #{_lambda_.1} parent=46 // pred_fallthru
            _
          %235 = vnop
        $region47: #{_lambda_.1} parent=19 // pred_fallthru
          _
      $region20: #{_lambda_.1} parent=5 // pred_fallthru
        _
      %p236 = scmp.le.s32.totalorder 1, %s9
      %p237 = scmp.lt.s32.totalorder %s9, 3
      %p238 = pnand %p236, %p237
      %p239 = pneg %p238
      // Predicated region
      $region67: #{_lambda_.1} parent=5 // pred_check
        _
      $region68: #{_lambda_.1} parent=5 // pred_check_branch
        %241 = sbr.rel (%p238) target = $region70
      $region69: #{_lambda_.1} parent=5 // pred_region
        %s242 = ssub.s32 %s9, 1
        %s243 = sand.u32 %s45, 1
        %s244 = sand.u32 %s45, 1
        %s245 = smul.addr %s244, 32
        %s246 = scalar_lea.vmem [#allocation2], %s245
        // Predicated region
        $region71: #{_lambda_.1} parent=69 // pred_check
          %p247 = pneg %p58
        $region72: #{_lambda_.1} parent=69 // pred_check_branch
          %249 = sbr.rel (%p247) target = $region74
        $region73: #{_lambda_.1} parent=69 // pred_region
          _
        $region74: #{_lambda_.1} parent=69 // pred_fallthru
          _
        %s250 = sand.u32 %s73, 1
        %s251 = sand.u32 %s73, 1
        %s252 = smul.addr %s251, 64
        %s253 = scalar_lea.vmem [#allocation3], %s252
        // Predicated region
        $region75: #{_lambda_.1} parent=69 // pred_check
          %p254 = pneg %p86
        $region76: #{_lambda_.1} parent=69 // pred_check_branch
          %256 = sbr.rel (%p254) target = $region78
        $region77: #{_lambda_.1} parent=69 // pred_region
          _
        $region78: #{_lambda_.1} parent=69 // pred_fallthru
          _
        %s257 = sand.u32 %s45, 1
        %s258 = sand.u32 %s45, 1
        %s259 = smul.addr %s258, 32
        %s260 = scalar_lea.vmem [#allocation2], %s259
        %p261 = pneg %p58
        %p262 = pneg %p55
        %s263 = sand.u32 %s73, 1
        %s264 = sand.u32 %s73, 1
        %s265 = smul.addr %s264, 64
        %s266 = scalar_lea.vmem [#allocation3], %s265
        %p267 = pneg %p86
        %p268 = pneg %p83
        %p269 = pneg %p107
        %p270 = pneg %p104
        %p271 = pneg %p135
        %p272 = pneg %p132
        %s273 = smul.u32 2, %s20
        %p274 = scmp.lt.s32.totalorder %s19, 1
        %s275 = scalar_select %p274, %s19, 1
        %p276 = scmp.lt.s32.totalorder %s273, 1
        %s277 = scalar_select %p276, %s273, 1
        %s278 = smul.addr %s275, 2
        %s279 = sadd.s32 %s277, %s278
        %s280 = smul.addr %s279, 8
        %s281 = scalar_lea.vmem %s3, %s280
        %s282 = sadd.s32 %s19, %s21
        %s283 = smul.u32 2, %s20
        %s284 = smul.u32 4, %s282
        %s285 = sadd.s32 %s19, %s21
        %s286 = smul.u32 4, %s285
        %s287 = smul.u32 2, %s20
        %p288 = scmp.lt.s32.totalorder %s19, 1
        %s289 = scalar_select %p288, %s19, 1
        %p290 = scmp.lt.s32.totalorder %s287, 1
        %s291 = scalar_select %p290, %s287, 1
        %s292 = smul.addr %s289, 2
        %s293 = sadd.s32 %s291, %s292
        %s294 = smul.addr %s293, 8
        %s295 = scalar_lea.vmem %s3, %s294
        %s296 = smul.u32 2, %s20
        %p298 = scmp.eq.s32.totalorder %s21, 0
        // Predicated region
        $region79: #{_lambda_.1} parent=69 // pred_check
          %p299 = pneg %p298
        $region80: #{_lambda_.1} parent=69 // pred_check_branch
          %301 = sbr.rel (%p299) target = $region82
        $region81: #{_lambda_.1} parent=69 // pred_region
          %p302 = scmp.eq.s32.totalorder %s19, 0
          %v303 = vld [vmem:[%s2] sm:$0x1]
          %s304 = scalar_select %p302, 1, 0
          %v305 = vstv %s304
          %vm306 = vcmp.eq.s32.totalorder %v305, 1
          %v307 = vsel %vm306, %v303, 0.0
          %v309 = vperm.slane %v307, 0
          %vm311 = vcmask 261120
          %312 = vst.msk [vmem:[%s295] sm:$0xff] %vm311, %v309
          %313 = vst.msk [vmem:[%s295 + $0x8] sm:$0xff] %vm311, %v309
        $region82: #{_lambda_.1} parent=69 // pred_fallthru
          _
        %v314 = vld [vmem:[%s295] sm:$0xff]
        %v315 = vld [vmem:[%s295 + $0x8] sm:$0xff]
        %v316 = vld [vmem:[%s246] sm:$0xff]
        %v317 = vld [vmem:[%s246 + $0x8] sm:$0xff]
        %v318 = vld [vmem:[%s246 + $0x10] sm:$0xff]
        %v319 = vld [vmem:[%s246 + $0x18] sm:$0xff]
        %v320 = vld [vmem:[%s253] sm:$0xff]
        %v321 = vld [vmem:[%s253 + $0x8] sm:$0xff]
        %v322 = vld [vmem:[%s253 + $0x10] sm:$0xff]
        %v323 = vld [vmem:[%s253 + $0x18] sm:$0xff]
        %v324 = vld [vmem:[%s253 + $0x20] sm:$0xff]
        %v325 = vld [vmem:[%s253 + $0x28] sm:$0xff]
        %v326 = vld [vmem:[%s253 + $0x30] sm:$0xff]
        %v327 = vld [vmem:[%s253 + $0x38] sm:$0xff]
        %v332 = vunpack.c.l.b16 %v316
        %v333 = vunpack.c.h.b16 %v316
        %v334 = vunpack.c.l.b16 %v317
        %v335 = vunpack.c.h.b16 %v317
        %v336 = vunpack.c.l.b16 %v318
        %v337 = vunpack.c.h.b16 %v318
        %v338 = vunpack.c.l.b16 %v319
        %v339 = vunpack.c.h.b16 %v319
        %v340 = vpack.c.b16 %v336, %v332
        %v341 = vpack.c.b16 %v337, %v333
        %v342 = vpack.c.b16 %v338, %v334
        %v343 = vpack.c.b16 %v339, %v335
        %v356 = vunpack.c.l.b16 %v320
        %v357 = vunpack.c.h.b16 %v320
        %v358 = vunpack.c.l.b16 %v321
        %v359 = vunpack.c.h.b16 %v321
        %v360 = vunpack.c.l.b16 %v322
        %v361 = vunpack.c.h.b16 %v322
        %v362 = vunpack.c.l.b16 %v323
        %v363 = vunpack.c.h.b16 %v323
        %v364 = vunpack.c.l.b16 %v324
        %v365 = vunpack.c.h.b16 %v324
        %v366 = vunpack.c.l.b16 %v325
        %v367 = vunpack.c.h.b16 %v325
        %v368 = vunpack.c.l.b16 %v326
        %v369 = vunpack.c.h.b16 %v326
        %v370 = vunpack.c.l.b16 %v327
        %v371 = vunpack.c.h.b16 %v327
        %v372 = vpack.c.b16 %v360, %v356
        %v373 = vpack.c.b16 %v361, %v357
        %v374 = vpack.c.b16 %v362, %v358
        %v375 = vpack.c.b16 %v363, %v359
        %v376 = vpack.c.b16 %v368, %v364
        %v377 = vpack.c.b16 %v369, %v365
        %v378 = vpack.c.b16 %v370, %v366
        %v379 = vpack.c.b16 %v371, %v367
        %388 = vmatpush.bf16.xpose.msra.mxu0 0
        %389 = vmatpush.bf16.xpose.msra.mxu0 0
        %390 = vmatpush.bf16.xpose.msra.mxu0 0
        %391 = vmatpush.bf16.xpose.msra.mxu0 0
        %392 = vmatpush.bf16.xpose.msra.mxu0 0
        %393 = vmatpush.bf16.xpose.msra.mxu0 0
        %394 = vmatpush.bf16.xpose.msra.mxu0 %v376
        %395 = vmatpush.bf16.xpose.msra.mxu0 %v372
        %396 = vmatmul.bf16.gmra.mxu0 %v340
        %v397 = vpop.f32.mrf.mxu0
        %v398 = vadd.f32 0.0, %v397
        %v399 = vpop.f32.mrf.mxu0
        %v400 = vadd.f32 0.0, %v399
        %401 = vdwg.mxu0
        %402 = vmatpush.bf16.xpose.msra.mxu0 0
        %403 = vmatpush.bf16.xpose.msra.mxu0 0
        %404 = vmatpush.bf16.xpose.msra.mxu0 0
        %405 = vmatpush.bf16.xpose.msra.mxu0 0
        %406 = vmatpush.bf16.xpose.msra.mxu0 0
        %407 = vmatpush.bf16.xpose.msra.mxu0 0
        %408 = vmatpush.bf16.xpose.msra.mxu0 %v377
        %409 = vmatpush.bf16.xpose.msra.mxu0 %v373
        %410 = vmatmul.bf16.gmra.mxu0 %v341
        %v411 = vpop.f32.mrf.mxu0
        %v412 = vadd.f32 %v398, %v411
        %v413 = vpop.f32.mrf.mxu0
        %v414 = vadd.f32 %v400, %v413
        %415 = vdwg.mxu0
        %416 = vmatpush.bf16.xpose.msra.mxu0 0
        %417 = vmatpush.bf16.xpose.msra.mxu0 0
        %418 = vmatpush.bf16.xpose.msra.mxu0 0
        %419 = vmatpush.bf16.xpose.msra.mxu0 0
        %420 = vmatpush.bf16.xpose.msra.mxu0 0
        %421 = vmatpush.bf16.xpose.msra.mxu0 0
        %422 = vmatpush.bf16.xpose.msra.mxu0 %v378
        %423 = vmatpush.bf16.xpose.msra.mxu0 %v374
        %424 = vmatmul.bf16.gmra.mxu0 %v342
        %v425 = vpop.f32.mrf.mxu0
        %v426 = vadd.f32 %v412, %v425
        %v427 = vpop.f32.mrf.mxu0
        %v428 = vadd.f32 %v414, %v427
        %429 = vdwg.mxu0
        %430 = vmatpush.bf16.xpose.msra.mxu0 0
        %431 = vmatpush.bf16.xpose.msra.mxu0 0
        %432 = vmatpush.bf16.xpose.msra.mxu0 0
        %433 = vmatpush.bf16.xpose.msra.mxu0 0
        %434 = vmatpush.bf16.xpose.msra.mxu0 0
        %435 = vmatpush.bf16.xpose.msra.mxu0 0
        %436 = vmatpush.bf16.xpose.msra.mxu0 %v379
        %437 = vmatpush.bf16.xpose.msra.mxu0 %v375
        %438 = vmatmul.bf16.gmra.mxu0 %v343
        %v439 = vpop.f32.mrf.mxu0
        %v440 = vadd.f32 %v426, %v439
        %v441 = vpop.f32.mrf.mxu0
        %v442 = vadd.f32 %v428, %v441
        %443 = vdwg.mxu0
        %v444 = vadd.f32 %v314, %v440
        %v445 = vadd.f32 %v315, %v442
        %vm446 = vcmask 261120
        %447 = vst.msk [vmem:[%s295] sm:$0xff] %vm446, %v444
        %448 = vst.msk [vmem:[%s295 + $0x8] sm:$0xff] %vm446, %v445
        %s449 = smul.u32 2, %s20
        %p450 = scmp.lt.s32.totalorder %s19, 1
        %s451 = scalar_select %p450, %s19, 1
        %p452 = scmp.lt.s32.totalorder %s449, 1
        %s453 = scalar_select %p452, %s449, 1
        %s454 = smul.addr %s451, 2
        %s455 = sadd.s32 %s453, %s454
        %s456 = smul.addr %s455, 8
        %s457 = scalar_lea.vmem %s3, %s456
        // Predicated region
        $region83: #{_lambda_.1} parent=69 // pred_check
          %p458 = pneg %p132
        $region84: #{_lambda_.1} parent=69 // pred_check_branch
          %460 = sbr.rel (%p458) target = $region86
        $region85: #{_lambda_.1} parent=69 // pred_region
          %s461 = smul.u32 2, %s20
        $region86: #{_lambda_.1} parent=69 // pred_fallthru
          _
      $region70: #{_lambda_.1} parent=5 // pred_fallthru
        _
      %p462 = scmp.le.s32.totalorder 2, %s9
      // Predicated region
      $region87: #{_lambda_.1} parent=5 // pred_check
        %p463 = pneg %p462
      $region88: #{_lambda_.1} parent=5 // pred_check_branch
        %465 = sbr.rel (%p463) target = $region90
      $region89: #{_lambda_.1} parent=5 // pred_region
        %s466 = ssub.s32 %s9, 2
        // Predicated region
        $region91: #{_lambda_.1} parent=89 // pred_check
          %p467 = pneg %p138
        $region92: #{_lambda_.1} parent=89 // pred_check_branch
          %469 = sbr.rel (%p467) target = $region94
        $region93: #{_lambda_.1} parent=89 // pred_region
          %s470 = smul.u32 2, %s23
          %p471 = scmp.lt.s32.totalorder %s22, 1
          %s472 = scalar_select %p471, %s22, 1
          %p473 = scmp.lt.s32.totalorder %s470, 1
          %s474 = scalar_select %p473, %s470, 1
          %s475 = smul.addr %s472, 2
          %s476 = sadd.s32 %s474, %s475
          %s477 = smul.addr %s476, 8
          %s478 = scalar_lea.vmem %s3, %s477
        $region94: #{_lambda_.1} parent=89 // pred_fallthru
          _
      $region90: #{_lambda_.1} parent=5 // pred_fallthru
        _
    $region6: #{_lambda_.1} parent=1 // loop_footer
      %s13 = sadd.s32 1, %s9
    $region7: #{_lambda_.1} parent=1 // loop_footer_branch
      %8 = sbr.rel target = $region3
    $region8: #{_lambda_.1} parent=1 // loop_exit
      _

</llo_original>
